<compile_context>
chip_gen: v7x
topology: tpu7x:2x2x1
jax: 0.10.0
libtpu: 0.0.40
codegen_flags: <defaults>
</compile_context>

<pallas_src>
import functools
import math

import jax
import jax.numpy as jnp
from jax import lax
from jax.experimental import pallas as pl
from jax.experimental.pallas import tpu as pltpu


def _round_up(x, m):
    return (x + m - 1) // m * m


# ---------------------------------------------------------------------------
# Small-S path: fully fused projection + attention, one grid step per batch.
# ---------------------------------------------------------------------------
def _small_attn_kernel(*refs, attn_size, scale, has_mask, causal,
                       needs_pad_mask, valid_len):
    if has_mask:
        q_ref, k_ref, v_ref, mask_ref, w_ref, o_ref = refs
    else:
        q_ref, k_ref, v_ref, w_ref, o_ref = refs
        mask_ref = None

    A = attn_size
    w = w_ref[...]                                   # (E, 3A) bf16 fused weights
    wq_w = w[:, 0 * A:1 * A]
    wk_w = w[:, 1 * A:2 * A]
    wv_w = w[:, 2 * A:3 * A]

    # Projections (bf16 MXU operands, f32 accumulation).  1/sqrt(A) is folded into
    # the q projection (exact: masked entries are -inf, which is scale-invariant).
    qp = jnp.dot(q_ref[0], wq_w, preferred_element_type=jnp.float32) * scale
    kp = jnp.dot(k_ref[0], wk_w, preferred_element_type=jnp.float32)
    vp = jnp.dot(v_ref[0], wv_w, preferred_element_type=jnp.float32).astype(jnp.bfloat16)

    # scores = (q Wq / sqrt(A)) @ (k Wk)^T  -- trans-B, no transpose copy.
    s = lax.dot_general(qp.astype(jnp.bfloat16), kp.astype(jnp.bfloat16),
                        (((1,), (1,)), ((), ())),
                        preferred_element_type=jnp.float32)          # (t, t)

    masked = None
    if has_mask:
        masked = mask_ref[0].astype(jnp.int32) != 0
    if causal:
        row = lax.broadcasted_iota(jnp.int32, s.shape, 0)
        col = lax.broadcasted_iota(jnp.int32, s.shape, 1)
        c = col > row
        masked = c if masked is None else jnp.logical_or(masked, c)
    if needs_pad_mask:
        col = lax.broadcasted_iota(jnp.int32, s.shape, 1)
        c = col >= valid_len
        masked = c if masked is None else jnp.logical_or(masked, c)
    if masked is not None:
        s = jnp.where(masked, -jnp.inf, s)

    m = jnp.max(s, axis=-1, keepdims=True)
    # Fully-masked rows keep l == 0 -> NaN output, matching torch masked_fill+softmax.
    m_safe = jnp.where(m == -jnp.inf, 0.0, m)
    p = jnp.exp(s - m_safe)
    l = jnp.sum(p, axis=-1, keepdims=True)
    out = jnp.dot(p.astype(jnp.bfloat16), vp, preferred_element_type=jnp.float32)
    o_ref[0] = (out * pl.reciprocal(l, approx=False)).astype(o_ref.dtype)


def _attention_small(q, k, v, mask, w_fused, attn_size, scale, *, causal, out_dtype):
    B, S, E = q.shape
    A = attn_size
    t = _round_up(S, 8)
    pad = t - S

    qb = q.astype(jnp.bfloat16)
    kb = k.astype(jnp.bfloat16)
    vb = v.astype(jnp.bfloat16)
    if pad:
        qb = jnp.pad(qb, ((0, 0), (0, pad), (0, 0)))
        kb = jnp.pad(kb, ((0, 0), (0, pad), (0, 0)))
        vb = jnp.pad(vb, ((0, 0), (0, pad), (0, 0)))

    has_mask = mask is not None
    args = [qb, kb, vb]
    in_specs = [
        pl.BlockSpec((1, t, E), lambda b: (b, 0, 0)),
        pl.BlockSpec((1, t, E), lambda b: (b, 0, 0)),
        pl.BlockSpec((1, t, E), lambda b: (b, 0, 0)),
    ]
    if has_mask:
        mask_i8 = (mask != 0).astype(jnp.int8)
        if pad:
            mask_i8 = jnp.pad(mask_i8, ((0, 0), (0, pad), (0, pad)), constant_values=1)
        args.append(mask_i8)
        in_specs.append(pl.BlockSpec((1, t, t), lambda b: (b, 0, 0)))
    args.append(w_fused)
    in_specs.append(pl.BlockSpec((E, 3 * A), lambda b: (0, 0)))

    kernel = functools.partial(
        _small_attn_kernel, attn_size=A, scale=scale, has_mask=has_mask,
        causal=causal, needs_pad_mask=(pad > 0 and not has_mask and not causal),
        valid_len=S)

    out = pl.pallas_call(
        kernel,
        out_shape=jax.ShapeDtypeStruct((B, t, A), out_dtype),
        grid_spec=pltpu.PrefetchScalarGridSpec(
            num_scalar_prefetch=0,
            grid=(B,),
            in_specs=in_specs,
            out_specs=pl.BlockSpec((1, t, A), lambda b: (b, 0, 0)),
        ),
        compiler_params=pltpu.CompilerParams(dimension_semantics=("parallel",)),
    )(*args)
    return out[:, :S, :]


# ---------------------------------------------------------------------------
# Flash path: pre-projected q/k/v, online softmax over kv tiles.
# ---------------------------------------------------------------------------
def _flash_attn_kernel(*refs, tq, tk, has_mask, causal, needs_pad_mask, valid_len):
    if has_mask:
        q_ref, k_ref, v_ref, mask_ref, o_ref, m_sc, l_sc, acc_sc = refs
    else:
        q_ref, k_ref, v_ref, o_ref, m_sc, l_sc, acc_sc = refs
        mask_ref = None

    qi = pl.program_id(1)
    kv = pl.program_id(2)

    @pl.when(kv == 0)
    def _init():
        m_sc[...] = jnp.full_like(m_sc, -jnp.inf)
        l_sc[...] = jnp.zeros_like(l_sc)
        acc_sc[...] = jnp.zeros_like(acc_sc)

    def _update():
        # scores = q_scaled @ k^T (both already projected, bf16; trans-B dot).
        s = lax.dot_general(q_ref[0], k_ref[0], (((1,), (1,)), ((), ())),
                            preferred_element_type=jnp.float32)      # (tq, tk)
        masked = None
        if has_mask:
            masked = mask_ref[0].astype(jnp.int32) != 0
        if causal:
            row = qi * tq + lax.broadcasted_iota(jnp.int32, s.shape, 0)
            col = kv * tk + lax.broadcasted_iota(jnp.int32, s.shape, 1)
            c = col > row
            masked = c if masked is None else jnp.logical_or(masked, c)
        if needs_pad_mask:
            col = kv * tk + lax.broadcasted_iota(jnp.int32, s.shape, 1)
            c = col >= valid_len
            masked = c if masked is None else jnp.logical_or(masked, c)
        if masked is not None:
            s = jnp.where(masked, -jnp.inf, s)

        m_prev = m_sc[...]
        m_new = jnp.maximum(m_prev, jnp.max(s, axis=-1, keepdims=True))
        m_safe = jnp.where(m_new == -jnp.inf, 0.0, m_new)
        alpha = jnp.exp(m_prev - m_safe)
        # bf16 exp: relieves the EUP slot on v6e/v7x (correct everywhere).
        p = jnp.exp((s - m_safe).astype(jnp.bfloat16))
        l_sc[...] = alpha * l_sc[...] + jnp.sum(p.astype(jnp.float32),
                                                axis=-1, keepdims=True)
        acc_sc[...] = alpha * acc_sc[...] + jnp.dot(
            p, v_ref[0], preferred_element_type=jnp.float32)
        m_sc[...] = m_new

    if causal:
        # Skip kv tiles lying entirely above the diagonal (fully masked).
        pl.when(kv * tk <= qi * tq + (tq - 1))(_update)
    else:
        _update()

    @pl.when(kv == pl.num_programs(2) - 1)
    def _finalize():
        inv_l = pl.reciprocal(l_sc[...], approx=False)
        o_ref[0] = (acc_sc[...] * inv_l).astype(o_ref.dtype)


def _attention_flash(q, k, v, mask, wq, wk, wv, scale, *, causal, tq, tk, out_dtype):
    B, S, E = q.shape
    A = wq.shape[0]

    # Project ONCE outside the kernel (review item: no per-q-tile K/V reprojection);
    # also shrinks the kernel's HBM streams (A <= E, bf16).  Q is pre-scaled.
    qp = (jnp.einsum("bse,ae->bsa", q, wq) * scale).astype(jnp.bfloat16)
    kp = jnp.einsum("bse,ae->bsa", k, wk).astype(jnp.bfloat16)
    vp = jnp.einsum("bse,ae->bsa", v, wv).astype(jnp.bfloat16)

    s_pad = _round_up(S, 128)
    if tk is None:
        tk = next(c for c in (512, 256, 128) if s_pad % c == 0)
    if tq is None:
        tq = next(c for c in (256, 128) if s_pad % c == 0)
    assert s_pad % tq == 0 and s_pad % tk == 0, (s_pad, tq, tk)

    pad = s_pad - S
    if pad:
        qp = jnp.pad(qp, ((0, 0), (0, pad), (0, 0)))
        kp = jnp.pad(kp, ((0, 0), (0, pad), (0, 0)))
        vp = jnp.pad(vp, ((0, 0), (0, pad), (0, 0)))

    has_mask = mask is not None
    args = [qp, kp, vp]
    in_specs = [
        pl.BlockSpec((1, tq, A), lambda b, i, j: (b, i, 0)),
        pl.BlockSpec((1, tk, A), lambda b, i, j: (b, j, 0)),
        pl.BlockSpec((1, tk, A), lambda b, i, j: (b, j, 0)),
    ]
    if has_mask:
        mask_i8 = (mask != 0).astype(jnp.int8)
        if pad:
            mask_i8 = jnp.pad(mask_i8, ((0, 0), (0, pad), (0, pad)), constant_values=1)
        args.append(mask_i8)
        in_specs.append(pl.BlockSpec((1, tq, tk), lambda b, i, j: (b, i, j)))

    kernel = functools.partial(
        _flash_attn_kernel, tq=tq, tk=tk, has_mask=has_mask, causal=causal,
        needs_pad_mask=(pad > 0 and not has_mask and not causal), valid_len=S)

    grid = (B, s_pad // tq, s_pad // tk)
    out = pl.pallas_call(
        kernel,
        out_shape=jax.ShapeDtypeStruct((B, s_pad, A), out_dtype),
        grid_spec=pltpu.PrefetchScalarGridSpec(
            num_scalar_prefetch=0,
            grid=grid,
            in_specs=in_specs,
            out_specs=pl.BlockSpec((1, tq, A), lambda b, i, j: (b, i, 0)),
            scratch_shapes=[
                pltpu.VMEM((tq, 1), jnp.float32),    # running max m
                pltpu.VMEM((tq, 1), jnp.float32),    # running denom l
                pltpu.VMEM((tq, A), jnp.float32),    # running accumulator
            ],
        ),
        compiler_params=pltpu.CompilerParams(
            dimension_semantics=("parallel", "parallel", "arbitrary")),
    )(*args)
    return out[:, :S, :]


# ---------------------------------------------------------------------------
# Public wrapper (eval-mode forward of `Atention`).
# ---------------------------------------------------------------------------
def attention_pallas(q, k, v, mask, wq, wk, wv, *, causal=False, tq=None, tk=None,
                     small_path_max=256):
    """q,k,v: (B,S,E); mask: (B,S,S) (nonzero == masked) or None (ignored if
    causal=True); wq/wk/wv: (A,E) nn.Linear-style weights. Returns (B,S,A)."""
    B, S, E = q.shape
    A = wq.shape[0]
    out_dtype = q.dtype
    scale = 1.0 / math.sqrt(A)
    if causal:
        mask = None   # causal mask is generated in-kernel; no HBM mask stream.

    if _round_up(S, 8) <= small_path_max and tq is None and tk is None:
        w_fused = jnp.concatenate([wq.T, wk.T, wv.T], axis=1).astype(jnp.bfloat16)
        return _attention_small(q, k, v, mask, w_fused, A, scale,
                                causal=causal, out_dtype=out_dtype)
    return _attention_flash(q, k, v, mask, wq, wk, wv, scale, causal=causal,
                            tq=tq, tk=tk, out_dtype=out_dtype)


def attention_reference(q, k, v, mask, wq, wk, wv):
    """Pure-JAX f32 reference mirroring the PyTorch forward (eval mode)."""
    qp = q @ wq.T
    kp = k @ wk.T
    vp = v @ wv.T
    prod = jnp.einsum("bqa,bka->bqk", qp, kp)
    if mask is not None:
        prod = jnp.where(mask != 0, -jnp.inf, prod)
    prod = prod / math.sqrt(kp.shape[-1])
    attn = jax.nn.softmax(prod, axis=-1)
    return jnp.einsum("bqk,bka->bqa", attn, vp)


if __name__ == "__main__":
    # Small shapes consistent with the module: batch=2, seq=8, embed=32, attn=16.
    B, S, E, A = 2, 8, 32, 16

    key = jax.random.PRNGKey(0)
    kq, kk, kv_, kwq, kwk, kwv = jax.random.split(key, 6)
    q = jax.random.normal(kq, (B, S, E), dtype=jnp.float32)
    k = jax.random.normal(kk, (B, S, E), dtype=jnp.float32)
    v = jax.random.normal(kv_, (B, S, E), dtype=jnp.float32)

    # Deterministic nn.Linear-style init: U(-1/sqrt(E), 1/sqrt(E)), shape (A, E).
    bound = 1.0 / math.sqrt(E)
    wq = jax.random.uniform(kwq, (A, E), jnp.float32, -bound, bound)
    wk = jax.random.uniform(kwk, (A, E), jnp.float32, -bound, bound)
    wv = jax.random.uniform(kwv, (A, E), jnp.float32, -bound, bound)

    # Causal-style mask (upper triangle masked) so every row keeps >= 1 valid entry.
    tri = jnp.triu(jnp.ones((S, S), dtype=jnp.int32), k=1)
    mask = jnp.broadcast_to(tri, (B, S, S))

    # 1) Small fused path, explicit mask tensor.
    out = jax.block_until_ready(attention_pallas(q, k, v, mask, wq, wk, wv))
    ref = attention_reference(q, k, v, mask, wq, wk, wv)
    assert out.shape == (B, S, A), out.shape
    assert jnp.allclose(out, ref, atol=5e-2, rtol=5e-2), "mismatch: small/masked"

    # 2) Small fused path, mask=None (maskless specialized kernel, no mask DMA).
    out_nm = jax.block_until_ready(attention_pallas(q, k, v, None, wq, wk, wv))
    ref_nm = attention_reference(q, k, v, None, wq, wk, wv)
    assert jnp.allclose(out_nm, ref_nm, atol=5e-2, rtol=5e-2), "mismatch: small/unmasked"

    # 3) Flash path (pre-projected q/k/v), explicit mask tensor, default tiles.
    S2 = 512
    kq2, kk2, kv2 = jax.random.split(jax.random.PRNGKey(1), 3)
    q2 = jax.random.normal(kq2, (B, S2, E), dtype=jnp.float32)
    k2 = jax.random.normal(kk2, (B, S2, E), dtype=jnp.float32)
    v2 = jax.random.normal(kv2, (B, S2, E), dtype=jnp.float32)
    tri2 = jnp.triu(jnp.ones((S2, S2), dtype=jnp.int32), k=1)
    mask2 = jnp.broadcast_to(tri2, (B, S2, S2))
    ref2 = attention_reference(q2, k2, v2, mask2, wq, wk, wv)

    out2 = jax.block_until_ready(attention_pallas(q2, k2, v2, mask2, wq, wk, wv))
    assert out2.shape == (B, S2, A), out2.shape
    assert jnp.allclose(out2, ref2, atol=5e-2, rtol=5e-2), "mismatch: flash/masked"

    # 4) Flash path with in-kernel causal mask (zero HBM mask traffic, tile skipping)
    #    and small tiles to exercise multi-kv-tile online-softmax accumulation.
    out3 = jax.block_until_ready(
        attention_pallas(q2, k2, v2, None, wq, wk, wv, causal=True, tq=128, tk=128))
    assert jnp.allclose(out3, ref2, atol=5e-2, rtol=5e-2), "mismatch: flash/causal"

    print("KERNEL_OK")
</pallas_src>

<mosaic_0001>
module attributes {stable_mosaic.version = 11 : i64} {
  func.func @_small_attn_kernel(%arg0: i32, %arg1: memref<1x8x32xbf16, #tpu.memory_space<vmem>>, %arg2: memref<1x8x32xbf16, #tpu.memory_space<vmem>>, %arg3: memref<1x8x32xbf16, #tpu.memory_space<vmem>>, %arg4: memref<1x8x8xi8, #tpu.memory_space<vmem>>, %arg5: memref<32x48xbf16, #tpu.memory_space<vmem>>, %arg6: memref<1x8x16xf32, #tpu.memory_space<vmem>>) attributes {dimension_semantics = [#tpu.dimension_semantics<parallel>], iteration_bounds = array<i64: 2>, scalar_prefetch = 0 : i64, scratch_operands = 0 : i64, tpu.core_type = #tpu.core_type<tc>, window_params = [{transform_indices = @transform_0, window_bounds = array<i64: 1, 8, 32>}, {transform_indices = @transform_1, window_bounds = array<i64: 1, 8, 32>}, {transform_indices = @transform_2, window_bounds = array<i64: 1, 8, 32>}, {transform_indices = @transform_3, window_bounds = array<i64: 1, 8, 8>}, {pipeline_mode = #tpu.pipeline_mode<synchronous>, transform_indices = @transform_4, window_bounds = array<i64: 32, 48>}, {transform_indices = @transform_5, window_bounds = array<i64: 1, 8, 16>}]} {
    %c0 = arith.constant 0 : index
    %c0_0 = arith.constant 0 : index
    %0 = vector.load %arg5[%c0, %c0_0] : memref<32x48xbf16, #tpu.memory_space<vmem>>, vector<32x48xbf16>
    %1 = vector.extract_strided_slice %0 {offsets = [0, 0], sizes = [32, 16], strides = [1, 1]} : vector<32x48xbf16> to vector<32x16xbf16>
    %2 = vector.extract_strided_slice %0 {offsets = [0, 16], sizes = [32, 16], strides = [1, 1]} : vector<32x48xbf16> to vector<32x16xbf16>
    %3 = vector.extract_strided_slice %0 {offsets = [0, 32], sizes = [32, 16], strides = [1, 1]} : vector<32x48xbf16> to vector<32x16xbf16>
    %c0_1 = arith.constant 0 : index
    %c0_2 = arith.constant 0 : index
    %c0_3 = arith.constant 0 : index
    %4 = vector.load %arg1[%c0_1, %c0_2, %c0_3] : memref<1x8x32xbf16, #tpu.memory_space<vmem>>, vector<1x8x32xbf16>
    %5 = vector.shape_cast %4 : vector<1x8x32xbf16> to vector<8x32xbf16>
    %cst = arith.constant dense<0.000000e+00> : vector<8x16xf32>
    %6 = tpu.matmul %5, %1, %cst {dimension_numbers = #tpu.dot_dimension_numbers<[1], [0], [0], [1], [0, 0, 1, 1], [], []>} : vector<8x32xbf16>, vector<32x16xbf16>, vector<8x16xf32> -> vector<8x16xf32>
    %cst_4 = arith.constant 2.500000e-01 : f32
    %7 = vector.broadcast %cst_4 : f32 to vector<8x16xf32>
    %8 = arith.mulf %6, %7 : vector<8x16xf32>
    %c0_5 = arith.constant 0 : index
    %c0_6 = arith.constant 0 : index
    %c0_7 = arith.constant 0 : index
    %9 = vector.load %arg2[%c0_5, %c0_6, %c0_7] : memref<1x8x32xbf16, #tpu.memory_space<vmem>>, vector<1x8x32xbf16>
    %10 = vector.shape_cast %9 : vector<1x8x32xbf16> to vector<8x32xbf16>
    %cst_8 = arith.constant dense<0.000000e+00> : vector<8x16xf32>
    %11 = tpu.matmul %10, %2, %cst_8 {dimension_numbers = #tpu.dot_dimension_numbers<[1], [0], [0], [1], [0, 0, 1, 1], [], []>} : vector<8x32xbf16>, vector<32x16xbf16>, vector<8x16xf32> -> vector<8x16xf32>
    %c0_9 = arith.constant 0 : index
    %c0_10 = arith.constant 0 : index
    %c0_11 = arith.constant 0 : index
    %12 = vector.load %arg3[%c0_9, %c0_10, %c0_11] : memref<1x8x32xbf16, #tpu.memory_space<vmem>>, vector<1x8x32xbf16>
    %13 = vector.shape_cast %12 : vector<1x8x32xbf16> to vector<8x32xbf16>
    %cst_12 = arith.constant dense<0.000000e+00> : vector<8x16xf32>
    %14 = tpu.matmul %13, %3, %cst_12 {dimension_numbers = #tpu.dot_dimension_numbers<[1], [0], [0], [1], [0, 0, 1, 1], [], []>} : vector<8x32xbf16>, vector<32x16xbf16>, vector<8x16xf32> -> vector<8x16xf32>
    %15 = arith.truncf %14 : vector<8x16xf32> to vector<8x16xbf16>
    %16 = arith.truncf %8 : vector<8x16xf32> to vector<8x16xbf16>
    %17 = arith.truncf %11 : vector<8x16xf32> to vector<8x16xbf16>
    %cst_13 = arith.constant dense<0.000000e+00> : vector<8x8xf32>
    %18 = tpu.matmul %16, %17, %cst_13 {dimension_numbers = #tpu.dot_dimension_numbers<[1], [1], [0], [0], [0, 0, 1, 0], [], []>} : vector<8x16xbf16>, vector<8x16xbf16>, vector<8x8xf32> -> vector<8x8xf32>
    %c0_14 = arith.constant 0 : index
    %c0_15 = arith.constant 0 : index
    %c0_16 = arith.constant 0 : index
    %19 = vector.load %arg4[%c0_14, %c0_15, %c0_16] : memref<1x8x8xi8, #tpu.memory_space<vmem>>, vector<1x8x8xi8>
    %20 = vector.shape_cast %19 : vector<1x8x8xi8> to vector<8x8xi8>
    %21 = arith.extsi %20 : vector<8x8xi8> to vector<8x8xi32>
    %c0_i32 = arith.constant 0 : i32
    %22 = vector.broadcast %c0_i32 : i32 to vector<8x8xi32>
    %23 = arith.cmpi ne, %21, %22 : vector<8x8xi32>
    %cst_17 = arith.constant 0xFF800000 : f32
    %24 = vector.broadcast %cst_17 : f32 to vector<8x8xf32>
    %25 = arith.select %23, %24, %18 : vector<8x8xi1>, vector<8x8xf32>
    %cst_18 = arith.constant dense<0xFF800000> : vector<8xf32>
    %26 = vector.multi_reduction <maximumf>, %25, %cst_18 [1] : vector<8x8xf32> to vector<8xf32>
    %27 = vector.shape_cast %26 : vector<8xf32> to vector<8x1xf32>
    %cst_19 = arith.constant 0xFF800000 : f32
    %28 = vector.broadcast %cst_19 : f32 to vector<8x1xf32>
    %29 = arith.cmpf oeq, %27, %28 : vector<8x1xf32>
    %cst_20 = arith.constant 0.000000e+00 : f32
    %30 = vector.broadcast %cst_20 : f32 to vector<8x1xf32>
    %31 = arith.select %29, %30, %27 : vector<8x1xi1>, vector<8x1xf32>
    %32 = vector.broadcast %31 : vector<8x1xf32> to vector<8x8xf32>
    %33 = arith.subf %25, %32 : vector<8x8xf32>
    %34 = math.exp %33 : vector<8x8xf32>
    %cst_21 = arith.constant dense<0.000000e+00> : vector<8xf32>
    %35 = vector.multi_reduction <add>, %34, %cst_21 [1] : vector<8x8xf32> to vector<8xf32>
    %36 = vector.shape_cast %35 : vector<8xf32> to vector<8x1xf32>
    %37 = arith.truncf %34 : vector<8x8xf32> to vector<8x8xbf16>
    %cst_22 = arith.constant dense<0.000000e+00> : vector<8x16xf32>
    %38 = tpu.matmul %37, %15, %cst_22 {dimension_numbers = #tpu.dot_dimension_numbers<[1], [0], [0], [1], [0, 0, 1, 1], [], []>} : vector<8x8xbf16>, vector<8x16xbf16>, vector<8x16xf32> -> vector<8x16xf32>
    %39 = tpu.reciprocal %36 : vector<8x1xf32> -> vector<8x1xf32>
    %40 = vector.broadcast %39 : vector<8x1xf32> to vector<8x16xf32>
    %41 = arith.mulf %38, %40 : vector<8x16xf32>
    %c0_23 = arith.constant 0 : index
    %c0_24 = arith.constant 0 : index
    %c0_25 = arith.constant 0 : index
    %42 = vector.load %arg6[%c0_23, %c0_24, %c0_25] : memref<1x8x16xf32, #tpu.memory_space<vmem>>, vector<1x8x16xf32>
    %43 = vector.shape_cast %42 : vector<1x8x16xf32> to vector<8x16xf32>
    %44 = vector.shape_cast %41 : vector<8x16xf32> to vector<1x8x16xf32>
    tpu.vector_store %arg6[%c0_23, %c0_24, %c0_25], %44 {strides = array<i32>} : memref<1x8x16xf32, #tpu.memory_space<vmem>>, vector<1x8x16xf32>,
    return
  }
  func.func @transform_0(%arg0: i32) -> (i32, i32, i32) {
    %c0_i32 = arith.constant 0 : i32
    %c0_i32_0 = arith.constant 0 : i32
    %c0_i32_1 = arith.constant 0 : i32
    return %arg0, %c0_i32, %c0_i32_0 : i32, i32, i32
  }
  func.func @transform_1(%arg0: i32) -> (i32, i32, i32) {
    %c0_i32 = arith.constant 0 : i32
    %c0_i32_0 = arith.constant 0 : i32
    %c0_i32_1 = arith.constant 0 : i32
    return %arg0, %c0_i32, %c0_i32_0 : i32, i32, i32
  }
  func.func @transform_2(%arg0: i32) -> (i32, i32, i32) {
    %c0_i32 = arith.constant 0 : i32
    %c0_i32_0 = arith.constant 0 : i32
    %c0_i32_1 = arith.constant 0 : i32
    return %arg0, %c0_i32, %c0_i32_0 : i32, i32, i32
  }
  func.func @transform_3(%arg0: i32) -> (i32, i32, i32) {
    %c0_i32 = arith.constant 0 : i32
    %c0_i32_0 = arith.constant 0 : i32
    %c0_i32_1 = arith.constant 0 : i32
    return %arg0, %c0_i32, %c0_i32_0 : i32, i32, i32
  }
  func.func @transform_4(%arg0: i32) -> (i32, i32) {
    %c0_i32 = arith.constant 0 : i32
    %c0_i32_0 = arith.constant 0 : i32
    %c0_i32_1 = arith.constant 0 : i32
    return %c0_i32, %c0_i32_0 : i32, i32
  }
  func.func @transform_5(%arg0: i32) -> (i32, i32, i32) {
    %c0_i32 = arith.constant 0 : i32
    %c0_i32_0 = arith.constant 0 : i32
    %c0_i32_1 = arith.constant 0 : i32
    return %arg0, %c0_i32, %c0_i32_0 : i32, i32, i32
  }
}

</mosaic_0001>

<llo_original>
// kernel: tpu_custom_call.1
$region0: #{tpu_custom_call.1}
  #allocation0 [shape = 'u32[]', space=smem, size = 0x4, offset = 0x4, fixed_abs, tag = 'smem constant byte address 0x4 - core index']
  #allocation1 [shape = 'u32[144,128]{1,0:T(1,128)}', space=vmem, size = 0x12000, scoped, tag = 'internal scratch']
  %s0 = inlined_call_operand.hbm [shape: bf16[2,8,32], index: 0, kind: input, shape index: {}]
  %s1 = inlined_call_operand.hbm [shape: bf16[2,8,32], index: 1, kind: input, shape index: {}]
  %s2 = inlined_call_operand.hbm [shape: bf16[2,8,32], index: 2, kind: input, shape index: {}]
  %s3 = inlined_call_operand.vmem [shape: s8[2,8,8], index: 3, kind: input, shape index: {}]
  %s4 = inlined_call_operand.hbm [shape: bf16[32,48], index: 4, kind: input, shape index: {}]
  %s5 = inlined_call_operand.hbm [shape: f32[2,8,16], index: 5, kind: output, shape index: {}]
  %s6 = sld [smem:[#allocation0]]
  $region69: #{tpu_custom_call.1} parent=0
    _
  %s8 = ssub.s32 1, %s6
  %s9 = scalar_select 0, %s8, %s6
  $region1: #{tpu_custom_call.1} parent=0
    #allocation2 [shape = 'u8[4096]{0}', space=vmem, size = 0x1000, scoped, tag = 'input window, operand 0']
    #allocation3 [shape = 's32[2]{0}', space=sflag, size = 0x8, scoped, tag = 'scoped memory for tpu_custom_call.1']
    #allocation4 [shape = 's32[2]{0}', space=sflag, size = 0x8, scoped, tag = 'scoped memory for tpu_custom_call.1']
    #allocation5 [shape = 'u8[4096]{0}', space=vmem, size = 0x1000, scoped, tag = 'input window, operand 1']
    #allocation6 [shape = 's32[2]{0}', space=sflag, size = 0x8, scoped, tag = 'scoped memory for tpu_custom_call.1']
    #allocation7 [shape = 'u8[4096]{0}', space=vmem, size = 0x1000, scoped, tag = 'input window, operand 2']
    #allocation8 [shape = 'u8[8192]{0}', space=vmem, size = 0x2000, scoped, tag = 'input window, operand 4, single buffered']
    #allocation9 [shape = 's32[1]{0}', space=sflag, size = 0x4, scoped, tag = 'scoped memory for tpu_custom_call.1']
    #allocation10 [shape = 'u8[8192]{0}', space=vmem, size = 0x2000, scoped, tag = 'output window, operand 0']
    %10 = vsyncpa [#allocation3], 0
    %s11 = scalar_lea.sflag [#allocation3], 1
    %12 = vsyncpa %s11, 0
    %13 = vsyncpa [#allocation6], 0
    %s14 = scalar_lea.sflag [#allocation6], 1
    %15 = vsyncpa %s14, 0
    %16 = vsyncpa [#allocation9], 0
    %17 = vsyncpa [#allocation4], 0
    %s18 = scalar_lea.sflag [#allocation4], 1
    %19 = vsyncpa %s18, 0
    loop: start=0, step=1, limit=4
    $region2: #{tpu_custom_call.1} parent=1 // loop_pre_header
      _
    $region3: #{tpu_custom_call.1} parent=1 // loop_header
      %s21 = sphi 0, %s25
      %p22 = scmp.ge.s32.totalorder %s21, 4
      %s31 = sphi 0, %s33
      %s34 = sphi 0, %s31
      %s35 = sphi 0, %s34
      %s51 = sphi 0, %s35
      %s57 = sphi 0, %s59
      %s60 = sphi 0, %s57
      %s61 = sphi 0, %s60
      %s77 = sphi 0, %s61
      %s83 = sphi 0, %s85
      %s86 = sphi 0, %s83
      %s87 = sphi 0, %s86
      %s103 = sphi 0, %s87
      %s109 = sphi 0, %s111
      %s112 = sphi 0, %s109
      %s113 = sphi 0, %s112
      %s129 = sphi 0, %s113
      %s133 = sphi 0, %s133
      %s135 = sphi 0, %s133
      %s136 = sphi 0, %s135
      %s150 = sphi 0, %s136
      %s156 = sphi 0, %s158
      %s159 = sphi 0, %s156
      %s160 = sphi 0, %s159
      %s176 = sphi 0, %s160
    $region4: #{tpu_custom_call.1} parent=1 // loop_header_branch
      %24 = sbr.rel (%p22) target = $region8
    $region5: #{tpu_custom_call.1} parent=1 // loop_body
      %s26 = ssub.s32 %s21, 1
      %s27 = ssub.s32 %s21, 2
      %s28 = sadd.s32 %s21, 1
      %s29 = ssub.s32 %s21, %s28
      %p30 = scmp.eq.s32.totalorder %s29, 0
      %s32 = sadd.s32 %s31, 1
      %s33 = scalar_select %p30, %s31, %s32
      %p36 = pneg %p30
      %p37 = scmp.eq.s32.totalorder %s21, 1
      %p38 = por %p36, %p37
      %p39 = scmp.ne.s32.totalorder %s31, %s34
      %p40 = scmp.eq.s32.totalorder %s21, 0
      %p41 = por %p39, %p40
      %p42 = scmp.ne.s32.totalorder %s31, %s34
      %p43 = scmp.eq.s32.totalorder %s26, 1
      %p44 = por %p42, %p43
      %p45 = scmp.ne.s32.totalorder %s34, %s35
      %p46 = scmp.eq.s32.totalorder %s26, 0
      %p47 = por %p45, %p46
      %p48 = scmp.ne.s32.totalorder %s34, %s35
      %p49 = scmp.eq.s32.totalorder %s27, 1
      %p50 = por %p48, %p49
      %p52 = scmp.ne.s32.totalorder %s35, %s51
      %p53 = scmp.eq.s32.totalorder %s27, 0
      %p54 = por %p52, %p53
      %s55 = ssub.s32 %s21, %s28
      %p56 = scmp.eq.s32.totalorder %s55, 0
      %s58 = sadd.s32 %s57, 1
      %s59 = scalar_select %p56, %s57, %s58
      %p62 = pneg %p56
      %p63 = scmp.eq.s32.totalorder %s21, 1
      %p64 = por %p62, %p63
      %p65 = scmp.ne.s32.totalorder %s57, %s60
      %p66 = scmp.eq.s32.totalorder %s21, 0
      %p67 = por %p65, %p66
      %p68 = scmp.ne.s32.totalorder %s57, %s60
      %p69 = scmp.eq.s32.totalorder %s26, 1
      %p70 = por %p68, %p69
      %p71 = scmp.ne.s32.totalorder %s60, %s61
      %p72 = scmp.eq.s32.totalorder %s26, 0
      %p73 = por %p71, %p72
      %p74 = scmp.ne.s32.totalorder %s60, %s61
      %p75 = scmp.eq.s32.totalorder %s27, 1
      %p76 = por %p74, %p75
      %p78 = scmp.ne.s32.totalorder %s61, %s77
      %p79 = scmp.eq.s32.totalorder %s27, 0
      %p80 = por %p78, %p79
      %s81 = ssub.s32 %s21, %s28
      %p82 = scmp.eq.s32.totalorder %s81, 0
      %s84 = sadd.s32 %s83, 1
      %s85 = scalar_select %p82, %s83, %s84
      %p88 = pneg %p82
      %p89 = scmp.eq.s32.totalorder %s21, 1
      %p90 = por %p88, %p89
      %p91 = scmp.ne.s32.totalorder %s83, %s86
      %p92 = scmp.eq.s32.totalorder %s21, 0
      %p93 = por %p91, %p92
      %p94 = scmp.ne.s32.totalorder %s83, %s86
      %p95 = scmp.eq.s32.totalorder %s26, 1
      %p96 = por %p94, %p95
      %p97 = scmp.ne.s32.totalorder %s86, %s87
      %p98 = scmp.eq.s32.totalorder %s26, 0
      %p99 = por %p97, %p98
      %p100 = scmp.ne.s32.totalorder %s86, %s87
      %p101 = scmp.eq.s32.totalorder %s27, 1
      %p102 = por %p100, %p101
      %p104 = scmp.ne.s32.totalorder %s87, %s103
      %p105 = scmp.eq.s32.totalorder %s27, 0
      %p106 = por %p104, %p105
      %s107 = ssub.s32 %s21, %s28
      %p108 = scmp.eq.s32.totalorder %s107, 0
      %s110 = sadd.s32 %s109, 1
      %s111 = scalar_select %p108, %s109, %s110
      %p114 = pneg %p108
      %p115 = scmp.eq.s32.totalorder %s21, 1
      %p116 = por %p114, %p115
      %p117 = scmp.ne.s32.totalorder %s109, %s112
      %p118 = scmp.eq.s32.totalorder %s21, 0
      %p119 = por %p117, %p118
      %p120 = scmp.ne.s32.totalorder %s109, %s112
      %p121 = scmp.eq.s32.totalorder %s26, 1
      %p122 = por %p120, %p121
      %p123 = scmp.ne.s32.totalorder %s112, %s113
      %p124 = scmp.eq.s32.totalorder %s26, 0
      %p125 = por %p123, %p124
      %p126 = scmp.ne.s32.totalorder %s112, %s113
      %p127 = scmp.eq.s32.totalorder %s27, 1
      %p128 = por %p126, %p127
      %p130 = scmp.ne.s32.totalorder %s113, %s129
      %p131 = scmp.eq.s32.totalorder %s27, 0
      %p132 = por %p130, %p131
      %s134 = sadd.s32 %s133, 1
      %p137 = scmp.eq.s32.totalorder %s21, 1
      %p138 = scmp.ne.s32.totalorder %s133, %s135
      %p139 = scmp.eq.s32.totalorder %s21, 0
      %p140 = por %p138, %p139
      %p141 = scmp.ne.s32.totalorder %s133, %s135
      %p142 = scmp.eq.s32.totalorder %s26, 1
      %p143 = por %p141, %p142
      %p144 = scmp.ne.s32.totalorder %s135, %s136
      %p145 = scmp.eq.s32.totalorder %s26, 0
      %p146 = por %p144, %p145
      %p147 = scmp.ne.s32.totalorder %s135, %s136
      %p148 = scmp.eq.s32.totalorder %s27, 1
      %p149 = por %p147, %p148
      %p151 = scmp.ne.s32.totalorder %s136, %s150
      %p152 = scmp.eq.s32.totalorder %s27, 0
      %p153 = por %p151, %p152
      %s154 = ssub.s32 %s21, %s28
      %p155 = scmp.eq.s32.totalorder %s154, 0
      %s157 = sadd.s32 %s156, 1
      %s158 = scalar_select %p155, %s156, %s157
      %p161 = pneg %p155
      %p162 = scmp.eq.s32.totalorder %s21, 1
      %p163 = por %p161, %p162
      %p164 = scmp.ne.s32.totalorder %s156, %s159
      %p165 = scmp.eq.s32.totalorder %s21, 0
      %p166 = por %p164, %p165
      %p167 = scmp.ne.s32.totalorder %s156, %s159
      %p168 = scmp.eq.s32.totalorder %s26, 1
      %p169 = por %p167, %p168
      %p170 = scmp.ne.s32.totalorder %s159, %s160
      %p171 = scmp.eq.s32.totalorder %s26, 0
      %p172 = por %p170, %p171
      %p173 = scmp.ne.s32.totalorder %s159, %s160
      %p174 = scmp.eq.s32.totalorder %s27, 1
      %p175 = por %p173, %p174
      %p177 = scmp.ne.s32.totalorder %s160, %s176
      %p178 = scmp.eq.s32.totalorder %s27, 0
      %p179 = por %p177, %p178
      %p180 = scmp.le.s32.totalorder 1, %s21
      %p181 = scmp.lt.s32.totalorder %s21, 3
      %p182 = pnand %p180, %p181
      %p183 = pneg %p182
      // Predicated region
      $region9: #{tpu_custom_call.1} parent=5 // pred_check
        _
      $region10: #{tpu_custom_call.1} parent=5 // pred_check_branch
        %185 = sbr.rel (%p182) target = $region12
      $region11: #{tpu_custom_call.1} parent=5 // pred_region
        %s186 = ssub.s32 %s21, 1
        // Predicated region
        $region13: #{tpu_custom_call.1} parent=11 // pred_check
          %p187 = pneg %p146
        $region14: #{tpu_custom_call.1} parent=11 // pred_check_branch
          %189 = sbr.rel (%p187) target = $region16
        $region15: #{tpu_custom_call.1} parent=11 // pred_region
          %s191 = ssub.s32 256, 256
          %192 = vsyncadd [#allocation9], %s191
          %s193 = sshll.u32 [#allocation8], 4
          %s194 = int_to_ptr.vmem [resolvable:$true] %s193
          %199 = dma.hbm_to_vmem [thread:$0]  %s4, 256, %s194, [#allocation9], 64, 64, 4
        $region16: #{tpu_custom_call.1} parent=11 // pred_fallthru
          _
      $region12: #{tpu_custom_call.1} parent=5 // pred_fallthru
        _
      %p200 = scmp.lt.s32.totalorder %s21, 2
      // Predicated region
      $region17: #{tpu_custom_call.1} parent=5 // pred_check
        %p201 = pneg %p200
      $region18: #{tpu_custom_call.1} parent=5 // pred_check_branch
        %203 = sbr.rel (%p201) target = $region20
      $region19: #{tpu_custom_call.1} parent=5 // pred_region
        // Predicated region
        $region21: #{tpu_custom_call.1} parent=19 // pred_check
          %p204 = pneg %p41
        $region22: #{tpu_custom_call.1} parent=19 // pred_check_branch
          %206 = sbr.rel (%p204) target = $region24
        $region23: #{tpu_custom_call.1} parent=19 // pred_region
          %s207 = sand.u32 %s31, 1
          %s208 = scalar_lea.sflag [#allocation3], %s207
          %s209 = sand.u32 %s31, 1
          %s210 = smul.addr %s209, 4
          %s211 = scalar_lea.vmem [#allocation2], %s210
          %s213 = ssub.s32 64, 64
          %214 = vsyncadd %s208, %s213
          %s215 = smul.addr %s21, 64
          %s216 = scalar_lea.hbm %s0, %s215
          %s218 = sshll.u32 %s211, 4
          %s219 = int_to_ptr.vmem [resolvable:$true] %s218
          %221 = dma.hbm_to_vmem [thread:$0]  %s216, 64, %s219, %s208
        $region24: #{tpu_custom_call.1} parent=19 // pred_fallthru
          _
        // Predicated region
        $region25: #{tpu_custom_call.1} parent=19 // pred_check
          %p222 = pneg %p67
        $region26: #{tpu_custom_call.1} parent=19 // pred_check_branch
          %224 = sbr.rel (%p222) target = $region28
        $region27: #{tpu_custom_call.1} parent=19 // pred_region
          %s225 = sand.u32 %s21, 1
          %s226 = scalar_lea.sflag [#allocation6], %s225
          %s227 = sand.u32 %s57, 1
          %s228 = smul.addr %s227, 4
          %s229 = scalar_lea.vmem [#allocation5], %s228
          %s231 = ssub.s32 64, 64
          %232 = vsyncadd %s226, %s231
          %s233 = smul.addr %s21, 64
          %s234 = scalar_lea.hbm %s1, %s233
          %s236 = sshll.u32 %s229, 4
          %s237 = int_to_ptr.vmem [resolvable:$true] %s236
          %239 = dma.hbm_to_vmem [thread:$0]  %s234, 64, %s237, %s226
        $region28: #{tpu_custom_call.1} parent=19 // pred_fallthru
          _
        // Predicated region
        $region29: #{tpu_custom_call.1} parent=19 // pred_check
          %p240 = pneg %p93
        $region30: #{tpu_custom_call.1} parent=19 // pred_check_branch
          %242 = sbr.rel (%p240) target = $region32
        $region31: #{tpu_custom_call.1} parent=19 // pred_region
          %s243 = sand.u32 %s21, 1
          %s244 = scalar_lea.sflag [#allocation6], %s243
          %s245 = sand.u32 %s83, 1
          %s246 = smul.addr %s245, 4
          %s247 = scalar_lea.vmem [#allocation7], %s246
          %s249 = ssub.s32 64, 64
          %250 = vsyncadd %s244, %s249
          %s251 = smul.addr %s21, 64
          %s252 = scalar_lea.hbm %s2, %s251
          %s254 = sshll.u32 %s247, 4
          %s255 = int_to_ptr.vmem [resolvable:$true] %s254
          %257 = dma.hbm_to_vmem [thread:$0]  %s252, 64, %s255, %s244
        $region32: #{tpu_custom_call.1} parent=19 // pred_fallthru
          _
        // Predicated region
        $region33: #{tpu_custom_call.1} parent=19 // pred_check
          %p258 = pneg %p119
        $region34: #{tpu_custom_call.1} parent=19 // pred_check_branch
          %260 = sbr.rel (%p258) target = $region36
        $region35: #{tpu_custom_call.1} parent=19 // pred_region
          %p261 = scmp.lt.s32.totalorder %s21, 1
          %s262 = scalar_select %p261, %s21, 1
          %s263 = smul.addr %s262, 2
          %s264 = scalar_lea.vmem %s3, %s263
        $region36: #{tpu_custom_call.1} parent=19 // pred_fallthru
          _
      $region20: #{tpu_custom_call.1} parent=5 // pred_fallthru
        _
      %p265 = scmp.le.s32.totalorder 1, %s21
      %p266 = scmp.lt.s32.totalorder %s21, 3
      %p267 = pnand %p265, %p266
      %p268 = pneg %p267
      // Predicated region
      $region37: #{tpu_custom_call.1} parent=5 // pred_check
        _
      $region38: #{tpu_custom_call.1} parent=5 // pred_check_branch
        %270 = sbr.rel (%p267) target = $region40
      $region39: #{tpu_custom_call.1} parent=5 // pred_region
        %s271 = ssub.s32 %s21, 1
        %s272 = sand.u32 %s34, 1
        %s273 = scalar_lea.sflag [#allocation3], %s272
        %s274 = sand.u32 %s34, 1
        %s275 = smul.addr %s274, 4
        %s276 = scalar_lea.vmem [#allocation2], %s275
        // Predicated region
        $region41: #{tpu_custom_call.1} parent=39 // pred_check
          %p277 = pneg %p47
        $region42: #{tpu_custom_call.1} parent=39 // pred_check_branch
          %279 = sbr.rel (%p277) target = $region44
        $region43: #{tpu_custom_call.1} parent=39 // pred_region
          %280 = dma.done %s273, 64
        $region44: #{tpu_custom_call.1} parent=39 // pred_fallthru
          _
        %s281 = sand.u32 %s26, 1
        %s282 = scalar_lea.sflag [#allocation6], %s281
        %s283 = sand.u32 %s60, 1
        %s284 = smul.addr %s283, 4
        %s285 = scalar_lea.vmem [#allocation5], %s284
        // Predicated region
        $region45: #{tpu_custom_call.1} parent=39 // pred_check
          %p286 = pneg %p73
        $region46: #{tpu_custom_call.1} parent=39 // pred_check_branch
          %288 = sbr.rel (%p286) target = $region48
        $region47: #{tpu_custom_call.1} parent=39 // pred_region
          %289 = dma.done %s282, 64
        $region48: #{tpu_custom_call.1} parent=39 // pred_fallthru
          _
        %s290 = sand.u32 %s26, 1
        %s291 = scalar_lea.sflag [#allocation6], %s290
        %s292 = sand.u32 %s86, 1
        %s293 = smul.addr %s292, 4
        %s294 = scalar_lea.vmem [#allocation7], %s293
        // Predicated region
        $region49: #{tpu_custom_call.1} parent=39 // pred_check
          %p295 = pneg %p99
        $region50: #{tpu_custom_call.1} parent=39 // pred_check_branch
          %297 = sbr.rel (%p295) target = $region52
        $region51: #{tpu_custom_call.1} parent=39 // pred_region
          %298 = dma.done %s291, 64
        $region52: #{tpu_custom_call.1} parent=39 // pred_fallthru
          _
        // Predicated region
        $region53: #{tpu_custom_call.1} parent=39 // pred_check
          %p299 = pneg %p146
        $region54: #{tpu_custom_call.1} parent=39 // pred_check_branch
          %301 = sbr.rel (%p299) target = $region56
        $region55: #{tpu_custom_call.1} parent=39 // pred_region
          %302 = dma.done [#allocation9], 256
        $region56: #{tpu_custom_call.1} parent=39 // pred_fallthru
          _
        %s303 = sand.u32 %s34, 1
        %s304 = scalar_lea.sflag [#allocation3], %s303
        %s305 = sand.u32 %s34, 1
        %s306 = smul.addr %s305, 4
        %s307 = scalar_lea.vmem [#allocation2], %s306
        %p308 = pneg %p47
        %p309 = pneg %p44
        %s310 = sand.u32 %s26, 1
        %s311 = scalar_lea.sflag [#allocation6], %s310
        %s312 = sand.u32 %s60, 1
        %s313 = smul.addr %s312, 4
        %s314 = scalar_lea.vmem [#allocation5], %s313
        %p315 = pneg %p73
        %p316 = pneg %p70
        %s317 = sand.u32 %s26, 1
        %s318 = scalar_lea.sflag [#allocation6], %s317
        %s319 = sand.u32 %s86, 1
        %s320 = smul.addr %s319, 4
        %s321 = scalar_lea.vmem [#allocation7], %s320
        %p322 = pneg %p99
        %p323 = pneg %p96
        %p324 = scmp.lt.s32.totalorder %s26, 1
        %s325 = scalar_select %p324, %s26, 1
        %s326 = smul.addr %s325, 2
        %s327 = scalar_lea.vmem %s3, %s326
        %p328 = pneg %p125
        %p329 = pneg %p122
        %p330 = pneg %p146
        %p331 = pneg %p143
        %p332 = pneg %p172
        %p333 = pneg %p169
        %s334 = sand.u32 %s159, 1
        %s335 = scalar_lea.sflag [#allocation4], %s334
        %s336 = sand.u32 %s159, 1
        %s337 = smul.addr %s336, 8
        %s338 = scalar_lea.vmem [#allocation10], %s337
        %p339 = scmp.lt.s32.totalorder %s26, 1
        %s340 = scalar_select %p339, %s26, 1
        %s341 = smul.addr %s340, 2
        %s342 = scalar_lea.vmem %s3, %s341
        %v344 = vld [vmem:[#allocation8] sm:$0xf]
        %v345 = vld [vmem:[#allocation8 + $0x4] sm:$0xf]
        %v346 = vld [vmem:[#allocation8 + $0x8] sm:$0xf]
        %v347 = vld [vmem:[#allocation8 + $0xc] sm:$0xf]
        %v348 = vld [vmem:[%s276] sm:$0xf]
        %v353 = vunpack.c.l.b16 %v344
        %v354 = vunpack.c.l.b16 %v345
        %v355 = vunpack.c.l.b16 %v346
        %v356 = vunpack.c.l.b16 %v347
        %v357 = vpack.c.b16 %v354, %v353
        %v358 = vpack.c.b16 %v356, %v355
        %vm361 = vcmask 261120
        %v363 = vsel %vm361, %v348, 0
        %365 = vmatprep.subr.bf16.mxu0 0
        %366 = vmatpush1.bf16.msra.mxu0 %v357
        %367 = vmatprep.subr.bf16.mxu0 0
        %368 = vmatpush1.bf16.msra.mxu0 %v358
        %369 = vmatprep.subr.bf16.mxu0 0
        %370 = vmatpush1.bf16.msra.mxu0 0
        %371 = vmatprep.subr.bf16.mxu0 0
        %372 = vmatpush1.bf16.msra.mxu0 0
        %373 = vmatprep.subr.bf16.mxu0 0
        %374 = vmatpush1.bf16.msra.mxu0 0
        %375 = vmatprep.subr.bf16.mxu0 0
        %376 = vmatpush1.bf16.msra.mxu0 0
        %377 = vmatprep.subr.bf16.mxu0 0
        %378 = vmatpush1.bf16.msra.mxu0 0
        %379 = vmatprep.subr.bf16.mxu0 0
        %380 = vmatpush1.bf16.msra.mxu0 0
        %381 = vmatprep.subr.bf16.mxu0 0
        %382 = vmatpush1.bf16.msra.mxu0 0
        %383 = vmatprep.subr.bf16.mxu0 0
        %384 = vmatpush1.bf16.msra.mxu0 0
        %385 = vmatprep.subr.bf16.mxu0 0
        %386 = vmatpush1.bf16.msra.mxu0 0
        %387 = vmatprep.subr.bf16.mxu0 0
        %388 = vmatpush1.bf16.msra.mxu0 0
        %389 = vmatprep.subr.bf16.mxu0 0
        %390 = vmatpush1.bf16.msra.mxu0 0
        %391 = vmatprep.subr.bf16.mxu0 0
        %392 = vmatpush1.bf16.msra.mxu0 0
        %393 = vmatprep.subr.bf16.mxu0 0
        %394 = vmatpush1.bf16.msra.mxu0 0
        %395 = vmatprep.subr.bf16.mxu0 0
        %396 = vmatpush1.bf16.msra.mxu0 0
        %397 = vmatprep.mubr.bf16.mxu0 0
        %398 = vmatmul.mubr.bf16.gmra.mrb[0].mxu0 %v363
        %v399 = vpop.f32.mrb[0].mxu0
        %v400 = vadd.f32 0.0, %v399
        %v401 = vpop.f32.mrb[0].mxu0
        %v402 = vpop.f32.mrb[0].mxu0
        %v403 = vpop.f32.mrb[0].mxu0
        %404 = vdwg.mxu0
        %v405 = vmul.f32 %v400, 0.25
        %v406 = vld [vmem:[%s285] sm:$0xf]
        %407 = vrot.lane.b32.xlu0 %v357, 112
        %v408 = vpop.permute.xlu0 %407
        %409 = vrot.lane.b32.xlu0 %v358, 112
        %v410 = vpop.permute.xlu0 %409
        %v414 = vsel %vm361, %v406, 0
        %416 = vmatprep.subr.bf16.mxu0 0
        %417 = vmatpush1.bf16.msra.mxu0 %v408
        %418 = vmatprep.subr.bf16.mxu0 0
        %419 = vmatpush1.bf16.msra.mxu0 %v410
        %420 = vmatprep.subr.bf16.mxu0 0
        %421 = vmatpush1.bf16.msra.mxu0 0
        %422 = vmatprep.subr.bf16.mxu0 0
        %423 = vmatpush1.bf16.msra.mxu0 0
        %424 = vmatprep.subr.bf16.mxu0 0
        %425 = vmatpush1.bf16.msra.mxu0 0
        %426 = vmatprep.subr.bf16.mxu0 0
        %427 = vmatpush1.bf16.msra.mxu0 0
        %428 = vmatprep.subr.bf16.mxu0 0
        %429 = vmatpush1.bf16.msra.mxu0 0
        %430 = vmatprep.subr.bf16.mxu0 0
        %431 = vmatpush1.bf16.msra.mxu0 0
        %432 = vmatprep.subr.bf16.mxu0 0
        %433 = vmatpush1.bf16.msra.mxu0 0
        %434 = vmatprep.subr.bf16.mxu0 0
        %435 = vmatpush1.bf16.msra.mxu0 0
        %436 = vmatprep.subr.bf16.mxu0 0
        %437 = vmatpush1.bf16.msra.mxu0 0
        %438 = vmatprep.subr.bf16.mxu0 0
        %439 = vmatpush1.bf16.msra.mxu0 0
        %440 = vmatprep.subr.bf16.mxu0 0
        %441 = vmatpush1.bf16.msra.mxu0 0
        %442 = vmatprep.subr.bf16.mxu0 0
        %443 = vmatpush1.bf16.msra.mxu0 0
        %444 = vmatprep.subr.bf16.mxu0 0
        %445 = vmatpush1.bf16.msra.mxu0 0
        %446 = vmatprep.subr.bf16.mxu0 0
        %447 = vmatpush1.bf16.msra.mxu0 0
        %448 = vmatprep.mubr.bf16.mxu0 0
        %449 = vmatmul.mubr.bf16.gmra.mrb[0].mxu0 %v414
        %v450 = vpop.f32.mrb[0].mxu0
        %v451 = vadd.f32 0.0, %v450
        %v452 = vpop.f32.mrb[0].mxu0
        %v453 = vpop.f32.mrb[0].mxu0
        %v454 = vpop.f32.mrb[0].mxu0
        %455 = vdwg.mxu0
        %v456 = vld [vmem:[%s294] sm:$0xf]
        %457 = vrot.lane.b32.xlu0 %v357, 96
        %v458 = vpop.permute.xlu0 %457
        %459 = vrot.lane.b32.xlu0 %v358, 96
        %v460 = vpop.permute.xlu0 %459
        %v464 = vsel %vm361, %v456, 0
        %466 = vmatprep.subr.bf16.mxu0 0
        %467 = vmatpush1.bf16.msra.mxu0 %v458
        %468 = vmatprep.subr.bf16.mxu0 0
        %469 = vmatpush1.bf16.msra.mxu0 %v460
        %470 = vmatprep.subr.bf16.mxu0 0
        %471 = vmatpush1.bf16.msra.mxu0 0
        %472 = vmatprep.subr.bf16.mxu0 0
        %473 = vmatpush1.bf16.msra.mxu0 0
        %474 = vmatprep.subr.bf16.mxu0 0
        %475 = vmatpush1.bf16.msra.mxu0 0
        %476 = vmatprep.subr.bf16.mxu0 0
        %477 = vmatpush1.bf16.msra.mxu0 0
        %478 = vmatprep.subr.bf16.mxu0 0
        %479 = vmatpush1.bf16.msra.mxu0 0
        %480 = vmatprep.subr.bf16.mxu0 0
        %481 = vmatpush1.bf16.msra.mxu0 0
        %482 = vmatprep.subr.bf16.mxu0 0
        %483 = vmatpush1.bf16.msra.mxu0 0
        %484 = vmatprep.subr.bf16.mxu0 0
        %485 = vmatpush1.bf16.msra.mxu0 0
        %486 = vmatprep.subr.bf16.mxu0 0
        %487 = vmatpush1.bf16.msra.mxu0 0
        %488 = vmatprep.subr.bf16.mxu0 0
        %489 = vmatpush1.bf16.msra.mxu0 0
        %490 = vmatprep.subr.bf16.mxu0 0
        %491 = vmatpush1.bf16.msra.mxu0 0
        %492 = vmatprep.subr.bf16.mxu0 0
        %493 = vmatpush1.bf16.msra.mxu0 0
        %494 = vmatprep.subr.bf16.mxu0 0
        %495 = vmatpush1.bf16.msra.mxu0 0
        %496 = vmatprep.subr.bf16.mxu0 0
        %497 = vmatpush1.bf16.msra.mxu0 0
        %498 = vmatprep.mubr.bf16.mxu0 0
        %499 = vmatmul.mubr.bf16.gmra.mrb[0].mxu0 %v464
        %v500 = vpop.f32.mrb[0].mxu0
        %v501 = vadd.f32 0.0, %v500
        %v502 = vpop.f32.mrb[0].mxu0
        %v503 = vpop.f32.mrb[0].mxu0
        %v504 = vpop.f32.mrb[0].mxu0
        %505 = vdwg.mxu0
        %v506 = vpack.c.bf16 %v501, %v501
        %v507 = vpack.c.bf16 %v405, %v405
        %v508 = vpack.c.bf16 %v451, %v451
        %vm509 = vcmask 130048
        %v511 = vsel %vm509, %v507, 0
        %v514 = vsel %vm509, %v508, 0
        %516 = vmatprep.subr.bf16.mxu0 0
        %517 = vmatpush1.bf16.xpose.msra.mxu0 %v514
        %518 = vmatprep.subr.bf16.mxu0 0
        %519 = vmatpush1.bf16.xpose.msra.mxu0 0
        %520 = vmatprep.subr.bf16.mxu0 0
        %521 = vmatpush1.bf16.xpose.msra.mxu0 0
        %522 = vmatprep.subr.bf16.mxu0 0
        %523 = vmatpush1.bf16.xpose.msra.mxu0 0
        %524 = vmatprep.subr.bf16.mxu0 0
        %525 = vmatpush1.bf16.xpose.msra.mxu0 0
        %526 = vmatprep.subr.bf16.mxu0 0
        %527 = vmatpush1.bf16.xpose.msra.mxu0 0
        %528 = vmatprep.subr.bf16.mxu0 0
        %529 = vmatpush1.bf16.xpose.msra.mxu0 0
        %530 = vmatprep.subr.bf16.mxu0 0
        %531 = vmatpush1.bf16.xpose.msra.mxu0 0
        %532 = vmatprep.subr.bf16.mxu0 0
        %533 = vmatpush1.bf16.xpose.msra.mxu0 0
        %534 = vmatprep.subr.bf16.mxu0 0
        %535 = vmatpush1.bf16.xpose.msra.mxu0 0
        %536 = vmatprep.subr.bf16.mxu0 0
        %537 = vmatpush1.bf16.xpose.msra.mxu0 0
        %538 = vmatprep.subr.bf16.mxu0 0
        %539 = vmatpush1.bf16.xpose.msra.mxu0 0
        %540 = vmatprep.subr.bf16.mxu0 0
        %541 = vmatpush1.bf16.xpose.msra.mxu0 0
        %542 = vmatprep.subr.bf16.mxu0 0
        %543 = vmatpush1.bf16.xpose.msra.mxu0 0
        %544 = vmatprep.subr.bf16.mxu0 0
        %545 = vmatpush1.bf16.xpose.msra.mxu0 0
        %546 = vmatprep.subr.bf16.mxu0 0
        %547 = vmatpush1.bf16.xpose.msra.mxu0 0
        %548 = vmatprep.mubr.bf16.mxu0 0
        %549 = vmatmul.mubr.bf16.gmra.mrb[0].mxu0 %v511
        %v550 = vpop.f32.mrb[0].mxu0
        %v551 = vadd.f32 0.0, %v550
        %v552 = vpop.f32.mrb[0].mxu0
        %v553 = vpop.f32.mrb[0].mxu0
        %v554 = vpop.f32.mrb[0].mxu0
        %555 = vdwg.mxu0
        %v556 = vld [vmem:[%s342] sm:$0x3]
        %v557 = vunpack.c.0.s8 %v556
        %vm558 = vcmp.ne.s32.totalorder %v557, 0
        %v559 = vsel %vm558, -inf, %v551
        %vm560 = vcmask 64512
        %v561 = vsel %vm560, %v559, -inf
        %562 = vmax.xlane.f32.xlu0 %v561
        %v563 = vpop.xlane.xlu0 %562
        %vm564 = vcmp.eq.f32.partialorder %v563, -inf
        %v565 = vsel %vm564, 0.0, %v563
        %v566 = vsub.f32 %v559, %v565
        %v567 = vmul.f32 %v566, 1.442695
        %v568 = vpow.pop %v567
        %v569 = vsel %vm560, %v568, 0.0
        %570 = vadd.xlane.f32.xlu0 %v569
        %v571 = vpop.xlane.xlu0 %570
        %v572 = vpack.c.bf16 %v568, %v568
        %v574 = vsel %vm560, %v572, 0
        %vm576 = vcmask 1043456
        %v578 = vsel %vm576, %v506, 0
        %580 = vmatprep.subr.bf16.mxu0 0
        %581 = vmatpush1.bf16.msra.mxu0 %v578
        %582 = vmatprep.subr.bf16.mxu0 0
        %583 = vmatpush1.bf16.msra.mxu0 0
        %584 = vmatprep.subr.bf16.mxu0 0
        %585 = vmatpush1.bf16.msra.mxu0 0
        %586 = vmatprep.subr.bf16.mxu0 0
        %587 = vmatpush1.bf16.msra.mxu0 0
        %588 = vmatprep.subr.bf16.mxu0 0
        %589 = vmatpush1.bf16.msra.mxu0 0
        %590 = vmatprep.subr.bf16.mxu0 0
        %591 = vmatpush1.bf16.msra.mxu0 0
        %592 = vmatprep.subr.bf16.mxu0 0
        %593 = vmatpush1.bf16.msra.mxu0 0
        %594 = vmatprep.subr.bf16.mxu0 0
        %595 = vmatpush1.bf16.msra.mxu0 0
        %596 = vmatprep.subr.bf16.mxu0 0
        %597 = vmatpush1.bf16.msra.mxu0 0
        %598 = vmatprep.subr.bf16.mxu0 0
        %599 = vmatpush1.bf16.msra.mxu0 0
        %600 = vmatprep.subr.bf16.mxu0 0
        %601 = vmatpush1.bf16.msra.mxu0 0
        %602 = vmatprep.subr.bf16.mxu0 0
        %603 = vmatpush1.bf16.msra.mxu0 0
        %604 = vmatprep.subr.bf16.mxu0 0
        %605 = vmatpush1.bf16.msra.mxu0 0
        %606 = vmatprep.subr.bf16.mxu0 0
        %607 = vmatpush1.bf16.msra.mxu0 0
        %608 = vmatprep.subr.bf16.mxu0 0
        %609 = vmatpush1.bf16.msra.mxu0 0
        %610 = vmatprep.subr.bf16.mxu0 0
        %611 = vmatpush1.bf16.msra.mxu0 0
        %612 = vmatprep.mubr.bf16.mxu0 0
        %613 = vmatmul.mubr.bf16.gmra.mrb[0].mxu0 %v574
        %v614 = vpop.f32.mrb[0].mxu0
        %v615 = vadd.f32 0.0, %v614
        %v616 = vpop.f32.mrb[0].mxu0
        %v617 = vpop.f32.mrb[0].mxu0
        %v618 = vpop.f32.mrb[0].mxu0
        %619 = vdwg.mxu0
        %v620 = vrcp.pop %v571
        %v621 = vmul.f32 %v615, %v620
        %622 = vst.msk [vmem:[%s338] sm:$0xff] %vm509, %v621
        %s623 = sand.u32 %s159, 1
        %s624 = scalar_lea.sflag [#allocation4], %s623
        %s625 = sand.u32 %s159, 1
        %s626 = smul.addr %s625, 8
        %s627 = scalar_lea.vmem [#allocation10], %s626
        // Predicated region
        $region57: #{tpu_custom_call.1} parent=39 // pred_check
          %p628 = pneg %p169
        $region58: #{tpu_custom_call.1} parent=39 // pred_check_branch
          %630 = sbr.rel (%p628) target = $region60
        $region59: #{tpu_custom_call.1} parent=39 // pred_region
          %s632 = ssub.s32 128, 128
          %633 = vsyncadd %s624, %s632
          %s634 = smul.addr %s26, 128
          %s635 = scalar_lea.hbm %s5, %s634
          %s637 = sshll.u32 %s627, 4
          %s638 = int_to_ptr.vmem [resolvable:$true] %s637
          %640 = dma.vmem_to_hbm [thread:$0]  %s638, 128, %s635, %s624
        $region60: #{tpu_custom_call.1} parent=39 // pred_fallthru
          _
      $region40: #{tpu_custom_call.1} parent=5 // pred_fallthru
        _
      %p641 = scmp.le.s32.totalorder 2, %s21
      // Predicated region
      $region61: #{tpu_custom_call.1} parent=5 // pred_check
        %p642 = pneg %p641
      $region62: #{tpu_custom_call.1} parent=5 // pred_check_branch
        %644 = sbr.rel (%p642) target = $region64
      $region63: #{tpu_custom_call.1} parent=5 // pred_region
        %s645 = ssub.s32 %s21, 2
        // Predicated region
        $region65: #{tpu_custom_call.1} parent=63 // pred_check
          %p646 = pneg %p175
        $region66: #{tpu_custom_call.1} parent=63 // pred_check_branch
          %648 = sbr.rel (%p646) target = $region68
        $region67: #{tpu_custom_call.1} parent=63 // pred_region
          %s649 = sand.u32 %s160, 1
          %s650 = scalar_lea.sflag [#allocation4], %s649
          %s651 = sand.u32 %s160, 1
          %s652 = smul.addr %s651, 8
          %s653 = scalar_lea.vmem [#allocation10], %s652
          %654 = dma.done %s650, 128
        $region68: #{tpu_custom_call.1} parent=63 // pred_fallthru
          _
      $region64: #{tpu_custom_call.1} parent=5 // pred_fallthru
        _
    $region6: #{tpu_custom_call.1} parent=1 // loop_footer
      %s25 = sadd.s32 1, %s21
    $region7: #{tpu_custom_call.1} parent=1 // loop_footer_branch
      %20 = sbr.rel target = $region3
    $region8: #{tpu_custom_call.1} parent=1 // loop_exit
      _
    %655 = vsyncpa [#allocation3], 1
    %s656 = scalar_lea.sflag [#allocation3], 1
    %657 = vsyncpa %s656, 1
    %658 = vsyncpa [#allocation6], 1
    %s659 = scalar_lea.sflag [#allocation6], 1
    %660 = vsyncpa %s659, 1
    %661 = vsyncpa [#allocation9], 1
    %662 = vsyncpa [#allocation4], 1
    %s663 = scalar_lea.sflag [#allocation4], 1
    %664 = vsyncpa %s663, 1

</llo_original>
